<compile_context>
chip_gen: v7x
topology: tpu7x:2x2x1
jax: 0.10.0
libtpu: 0.0.40
codegen_flags: <defaults>
</compile_context>

<pallas_src>
import jax
import jax.numpy as jnp
from jax.experimental import pallas as pl
from jax.experimental.pallas import tpu as pltpu


def _round_up(n, m):
    return ((n + m - 1) // m) * m


def _encoder_kernel(x_ref, t_ref, w1a_ref, w1b_ref, b1_ref, w2_ref, b2_ref,
                    out_ref, hid_ref):
    # Upcast (possibly bf16) storage dtype to f32 for all compute; MXU accumulates f32.
    x = x_ref[...].astype(jnp.float32)
    t = t_ref[...].astype(jnp.float32)
    # fc1 done as two matmuls (equivalent to hstack([x, task]) @ W1) + bias, ReLU.
    h = jnp.dot(x, w1a_ref[...], preferred_element_type=jnp.float32)
    h = h + jnp.dot(t, w1b_ref[...], preferred_element_type=jnp.float32)
    h = jnp.maximum(h + b1_ref[...], 0.0)
    hid_ref[...] = h.astype(hid_ref.dtype)
    # fc2 (16 -> 4): tiny; MXU has huge slack here, not worth special-casing.
    y = jnp.dot(h, w2_ref[...], preferred_element_type=jnp.float32)
    out_ref[...] = (y + b2_ref[...]).astype(out_ref.dtype)


def linear_encoder(x, task, w1, b1, w2, b2, *, block_b=1024):
    """x: (B, 32), task: (B, 2); w1: (34, 16), b1: (16,), w2: (16, 4), b2: (4,).

    Returns (fc2_out (B, 4) float32, relu_hidden (B, 16) in x.dtype).
    """
    B = x.shape[0]
    io_dtype = x.dtype
    task = task.astype(io_dtype)

    # Split fc1 weight so we never materialize hstack([x, task]) in HBM.
    w1a = w1[:32].astype(jnp.float32)
    w1b = w1[32:].astype(jnp.float32)
    b1r = b1.reshape(1, -1).astype(jnp.float32)
    w2f = w2.astype(jnp.float32)
    b2r = b2.reshape(1, -1).astype(jnp.float32)

    # Batch tile: multiple of 8 (sublane), capped so small batches are one tile.
    tb = min(_round_up(block_b, 8), _round_up(B, 8))
    bp = _round_up(B, tb)
    if bp != B:
        pad = bp - B
        x = jnp.pad(x, ((0, pad), (0, 0)))
        task = jnp.pad(task, ((0, pad), (0, 0)))

    grid = (bp // tb,)

    def batch_spec(cols):
        return pl.BlockSpec((tb, cols), lambda i: (i, 0))

    def const_spec(shape):
        return pl.BlockSpec(shape, lambda i: (0, 0))

    itemsize = jnp.dtype(io_dtype).itemsize
    flops = 2 * bp * (34 * 16 + 16 * 4)
    bytes_accessed = (bp * (32 + 2 + 16) * itemsize          # x, task in; hid out
                      + bp * 4 * 4                           # fc2 out (f32)
                      + (32 * 16 + 2 * 16 + 16 + 16 * 4 + 4) * 4)  # params (f32)

    out, hid = pl.pallas_call(
        _encoder_kernel,
        out_shape=(
            jax.ShapeDtypeStruct((bp, 4), jnp.float32),   # fc2(hid)
            jax.ShapeDtypeStruct((bp, 16), io_dtype),     # relu(fc1(.))
        ),
        grid_spec=pltpu.PrefetchScalarGridSpec(
            num_scalar_prefetch=0,
            grid=grid,
            in_specs=[
                batch_spec(32),         # x          (tiled over batch)
                batch_spec(2),          # task       (tiled over batch)
                const_spec((32, 16)),   # w1a        (VMEM-resident)
                const_spec((2, 16)),    # w1b
                const_spec((1, 16)),    # b1
                const_spec((16, 4)),    # w2
                const_spec((1, 4)),     # b2
            ],
            out_specs=(batch_spec(4), batch_spec(16)),
        ),
        compiler_params=pltpu.CompilerParams(
            dimension_semantics=("parallel",)),   # megacore sharding on v7x
        cost_estimate=pl.CostEstimate(
            flops=flops, transcendentals=0, bytes_accessed=bytes_accessed),
    )(x, task, w1a, w1b, b1r, w2f, b2r)

    if bp != B:
        out = out[:B]
        hid = hid[:B]
    return out, hid


def init_params(key):
    """Deterministic synthetic parameters matching nn.Linear shapes (transposed)."""
    k1, k2, k3, k4 = jax.random.split(key, 4)
    in1, out1 = 34, 16
    in2, out2 = 16, 4
    lim1 = 1.0 / jnp.sqrt(in1)
    lim2 = 1.0 / jnp.sqrt(in2)
    w1 = jax.random.uniform(k1, (in1, out1), jnp.float32, -lim1, lim1)
    b1 = jax.random.uniform(k2, (out1,), jnp.float32, -lim1, lim1)
    w2 = jax.random.uniform(k3, (in2, out2), jnp.float32, -lim2, lim2)
    b2 = jax.random.uniform(k4, (out2,), jnp.float32, -lim2, lim2)
    return w1, b1, w2, b2


if __name__ == "__main__":
    key = jax.random.PRNGKey(0)
    kx, kt, kp = jax.random.split(key, 3)
    B = 8
    x = jax.random.normal(kx, (B, 32), jnp.float32)
    task = jax.random.normal(kt, (B, 2), jnp.float32)
    w1, b1, w2, b2 = init_params(kp)

    # f32 path, single tile.
    out, hid = linear_encoder(x, task, w1, b1, w2, b2)
    jax.block_until_ready((out, hid))

    xcat = jnp.concatenate([x, task], axis=1)
    hid_ref = jnp.maximum(xcat @ w1 + b1, 0.0)
    out_ref = hid_ref @ w2 + b2
    assert out.shape == (B, 4) and hid.shape == (B, 16)
    assert jnp.allclose(hid, hid_ref, atol=1e-5), "hidden mismatch"
    assert jnp.allclose(out, out_ref, atol=1e-5), "output mismatch"

    # Multi-tile path with a batch that does not divide the tile size.
    B2 = 300
    kx2, kt2 = jax.random.split(jax.random.PRNGKey(1), 2)
    x2 = jax.random.normal(kx2, (B2, 32), jnp.float32)
    t2 = jax.random.normal(kt2, (B2, 2), jnp.float32)
    out2, hid2 = linear_encoder(x2, t2, w1, b1, w2, b2, block_b=128)
    jax.block_until_ready((out2, hid2))
    xcat2 = jnp.concatenate([x2, t2], axis=1)
    hid2_ref = jnp.maximum(xcat2 @ w1 + b1, 0.0)
    out2_ref = hid2_ref @ w2 + b2
    assert out2.shape == (B2, 4) and hid2.shape == (B2, 16)
    assert jnp.allclose(hid2, hid2_ref, atol=1e-5), "tiled hidden mismatch"
    assert jnp.allclose(out2, out2_ref, atol=1e-5), "tiled output mismatch"

    # bf16-I/O path (storage/DMA in bf16, f32 accumulation in-kernel).
    out3, hid3 = linear_encoder(x.astype(jnp.bfloat16), task.astype(jnp.bfloat16),
                                w1, b1, w2, b2)
    jax.block_until_ready((out3, hid3))
    assert hid3.dtype == jnp.bfloat16
    assert jnp.allclose(out3, out_ref, atol=1e-1), "bf16 output mismatch"
    assert jnp.allclose(hid3.astype(jnp.float32), hid_ref, atol=1e-1), "bf16 hidden mismatch"

    print("KERNEL_OK")
</pallas_src>

<mosaic_0001>
module attributes {stable_mosaic.version = 11 : i64} {
  func.func @_encoder_kernel(%arg0: i32, %arg1: memref<8x32xf32, #tpu.memory_space<vmem>>, %arg2: memref<8x2xf32, #tpu.memory_space<vmem>>, %arg3: memref<32x16xf32, #tpu.memory_space<vmem>>, %arg4: memref<2x16xf32, #tpu.memory_space<vmem>>, %arg5: memref<1x16xf32, #tpu.memory_space<vmem>>, %arg6: memref<16x4xf32, #tpu.memory_space<vmem>>, %arg7: memref<1x4xf32, #tpu.memory_space<vmem>>, %arg8: memref<8x4xf32, #tpu.memory_space<vmem>>, %arg9: memref<8x16xf32, #tpu.memory_space<vmem>>) attributes {dimension_semantics = [#tpu.dimension_semantics<parallel>], iteration_bounds = array<i64: 1>, scalar_prefetch = 0 : i64, scratch_operands = 0 : i64, tpu.core_type = #tpu.core_type<tc>, window_params = [{transform_indices = @transform_0, window_bounds = array<i64: 8, 32>}, {transform_indices = @transform_1, window_bounds = array<i64: 8, 2>}, {pipeline_mode = #tpu.pipeline_mode<synchronous>, transform_indices = @transform_2, window_bounds = array<i64: 32, 16>}, {pipeline_mode = #tpu.pipeline_mode<synchronous>, transform_indices = @transform_3, window_bounds = array<i64: 2, 16>}, {pipeline_mode = #tpu.pipeline_mode<synchronous>, transform_indices = @transform_4, window_bounds = array<i64: 1, 16>}, {pipeline_mode = #tpu.pipeline_mode<synchronous>, transform_indices = @transform_5, window_bounds = array<i64: 16, 4>}, {pipeline_mode = #tpu.pipeline_mode<synchronous>, transform_indices = @transform_6, window_bounds = array<i64: 1, 4>}, {transform_indices = @transform_7, window_bounds = array<i64: 8, 4>}, {transform_indices = @transform_8, window_bounds = array<i64: 8, 16>}]} {
    %c0 = arith.constant 0 : index
    %c0_0 = arith.constant 0 : index
    %0 = vector.load %arg1[%c0, %c0_0] : memref<8x32xf32, #tpu.memory_space<vmem>>, vector<8x32xf32>
    %c0_1 = arith.constant 0 : index
    %c0_2 = arith.constant 0 : index
    %1 = vector.load %arg2[%c0_1, %c0_2] : memref<8x2xf32, #tpu.memory_space<vmem>>, vector<8x2xf32>
    %c0_3 = arith.constant 0 : index
    %c0_4 = arith.constant 0 : index
    %2 = vector.load %arg3[%c0_3, %c0_4] : memref<32x16xf32, #tpu.memory_space<vmem>>, vector<32x16xf32>
    %cst = arith.constant dense<0.000000e+00> : vector<8x16xf32>
    %3 = tpu.matmul %0, %2, %cst {dimension_numbers = #tpu.dot_dimension_numbers<[1], [0], [0], [1], [0, 0, 1, 1], [], []>} : vector<8x32xf32>, vector<32x16xf32>, vector<8x16xf32> -> vector<8x16xf32>
    %c0_5 = arith.constant 0 : index
    %c0_6 = arith.constant 0 : index
    %4 = vector.load %arg4[%c0_5, %c0_6] : memref<2x16xf32, #tpu.memory_space<vmem>>, vector<2x16xf32>
    %cst_7 = arith.constant dense<0.000000e+00> : vector<8x16xf32>
    %5 = tpu.matmul %1, %4, %cst_7 {dimension_numbers = #tpu.dot_dimension_numbers<[1], [0], [0], [1], [0, 0, 1, 1], [], []>} : vector<8x2xf32>, vector<2x16xf32>, vector<8x16xf32> -> vector<8x16xf32>
    %6 = arith.addf %3, %5 : vector<8x16xf32>
    %c0_8 = arith.constant 0 : index
    %c0_9 = arith.constant 0 : index
    %7 = vector.load %arg5[%c0_8, %c0_9] : memref<1x16xf32, #tpu.memory_space<vmem>>, vector<1x16xf32>
    %8 = vector.broadcast %7 : vector<1x16xf32> to vector<8x16xf32>
    %9 = arith.addf %6, %8 : vector<8x16xf32>
    %cst_10 = arith.constant 0.000000e+00 : f32
    %10 = vector.broadcast %cst_10 : f32 to vector<8x16xf32>
    %11 = arith.maximumf %9, %10 : vector<8x16xf32>
    %c0_11 = arith.constant 0 : index
    %c0_12 = arith.constant 0 : index
    %12 = vector.load %arg9[%c0_11, %c0_12] : memref<8x16xf32, #tpu.memory_space<vmem>>, vector<8x16xf32>
    tpu.vector_store %arg9[%c0_11, %c0_12], %11 {strides = array<i32>} : memref<8x16xf32, #tpu.memory_space<vmem>>, vector<8x16xf32>,
    %c0_13 = arith.constant 0 : index
    %c0_14 = arith.constant 0 : index
    %13 = vector.load %arg6[%c0_13, %c0_14] : memref<16x4xf32, #tpu.memory_space<vmem>>, vector<16x4xf32>
    %cst_15 = arith.constant dense<0.000000e+00> : vector<8x4xf32>
    %14 = tpu.matmul %11, %13, %cst_15 {dimension_numbers = #tpu.dot_dimension_numbers<[1], [0], [0], [1], [0, 0, 1, 1], [], []>} : vector<8x16xf32>, vector<16x4xf32>, vector<8x4xf32> -> vector<8x4xf32>
    %c0_16 = arith.constant 0 : index
    %c0_17 = arith.constant 0 : index
    %15 = vector.load %arg7[%c0_16, %c0_17] : memref<1x4xf32, #tpu.memory_space<vmem>>, vector<1x4xf32>
    %16 = vector.broadcast %15 : vector<1x4xf32> to vector<8x4xf32>
    %17 = arith.addf %14, %16 : vector<8x4xf32>
    %c0_18 = arith.constant 0 : index
    %c0_19 = arith.constant 0 : index
    %18 = vector.load %arg8[%c0_18, %c0_19] : memref<8x4xf32, #tpu.memory_space<vmem>>, vector<8x4xf32>
    tpu.vector_store %arg8[%c0_18, %c0_19], %17 {strides = array<i32>} : memref<8x4xf32, #tpu.memory_space<vmem>>, vector<8x4xf32>,
    return
  }
  func.func @transform_0(%arg0: i32) -> (i32, i32) {
    %c0_i32 = arith.constant 0 : i32
    %c0_i32_0 = arith.constant 0 : i32
    return %arg0, %c0_i32 : i32, i32
  }
  func.func @transform_1(%arg0: i32) -> (i32, i32) {
    %c0_i32 = arith.constant 0 : i32
    %c0_i32_0 = arith.constant 0 : i32
    return %arg0, %c0_i32 : i32, i32
  }
  func.func @transform_2(%arg0: i32) -> (i32, i32) {
    %c0_i32 = arith.constant 0 : i32
    %c0_i32_0 = arith.constant 0 : i32
    %c0_i32_1 = arith.constant 0 : i32
    return %c0_i32, %c0_i32_0 : i32, i32
  }
  func.func @transform_3(%arg0: i32) -> (i32, i32) {
    %c0_i32 = arith.constant 0 : i32
    %c0_i32_0 = arith.constant 0 : i32
    %c0_i32_1 = arith.constant 0 : i32
    return %c0_i32, %c0_i32_0 : i32, i32
  }
  func.func @transform_4(%arg0: i32) -> (i32, i32) {
    %c0_i32 = arith.constant 0 : i32
    %c0_i32_0 = arith.constant 0 : i32
    %c0_i32_1 = arith.constant 0 : i32
    return %c0_i32, %c0_i32_0 : i32, i32
  }
  func.func @transform_5(%arg0: i32) -> (i32, i32) {
    %c0_i32 = arith.constant 0 : i32
    %c0_i32_0 = arith.constant 0 : i32
    %c0_i32_1 = arith.constant 0 : i32
    return %c0_i32, %c0_i32_0 : i32, i32
  }
  func.func @transform_6(%arg0: i32) -> (i32, i32) {
    %c0_i32 = arith.constant 0 : i32
    %c0_i32_0 = arith.constant 0 : i32
    %c0_i32_1 = arith.constant 0 : i32
    return %c0_i32, %c0_i32_0 : i32, i32
  }
  func.func @transform_7(%arg0: i32) -> (i32, i32) {
    %c0_i32 = arith.constant 0 : i32
    %c0_i32_0 = arith.constant 0 : i32
    return %arg0, %c0_i32 : i32, i32
  }
  func.func @transform_8(%arg0: i32) -> (i32, i32) {
    %c0_i32 = arith.constant 0 : i32
    %c0_i32_0 = arith.constant 0 : i32
    return %arg0, %c0_i32 : i32, i32
  }
}

</mosaic_0001>

<llo_original>
// kernel: tpu_custom_call.1
$region0: #{tpu_custom_call.1}
  #allocation0 [shape = 'u32[]', space=smem, size = 0x4, offset = 0x4, fixed_abs, tag = 'smem constant byte address 0x4 - core index']
  #allocation1 [shape = 'u32[144,128]{1,0:T(1,128)}', space=vmem, size = 0x12000, scoped, tag = 'internal scratch']
  %s0 = inlined_call_operand.vmem [shape: f32[8,32], index: 0, kind: input, shape index: {}]
  %s1 = inlined_call_operand.vmem [shape: f32[8,2], index: 1, kind: input, shape index: {}]
  %s2 = inlined_call_operand.vmem [shape: f32[32,16], index: 2, kind: input, shape index: {}]
  %s3 = inlined_call_operand.vmem [shape: f32[2,16], index: 3, kind: input, shape index: {}]
  %s4 = inlined_call_operand.vmem [shape: f32[1,16], index: 4, kind: input, shape index: {}]
  %s5 = inlined_call_operand.vmem [shape: f32[16,4], index: 5, kind: input, shape index: {}]
  %s6 = inlined_call_operand.vmem [shape: f32[1,4], index: 6, kind: input, shape index: {}]
  %s7 = inlined_call_operand.vmem [shape: f32[8,4], index: 7, kind: output, shape index: {0}]
  %s8 = inlined_call_operand.hbm [shape: f32[8,16], index: 8, kind: output, shape index: {1}]
  %9 = xla_tuple %s7, %s8
  %s10 = sld [smem:[#allocation0]]
  $region46: #{tpu_custom_call.1} parent=0
    _
  %s12 = ssub.s32 1, %s10
  %s13 = scalar_select 0, %s12, %s10
  $region1: #{tpu_custom_call.1} parent=0
    #allocation2 [shape = 'u8[4096]{0}', space=vmem, size = 0x1000, scoped, tag = 'output window, operand 1, single buffered']
    #allocation3 [shape = 's32[1]{0}', space=sflag, size = 0x4, scoped, tag = 'scoped memory for tpu_custom_call.1']
    %14 = vsyncpa [#allocation3], 0
    // Predicated region
    $region2: #{tpu_custom_call.1} parent=1 // pred_check
      _
    $region3: #{tpu_custom_call.1} parent=1 // pred_check_branch
      %16 = sbr.rel (0) target = $region5
    $region4: #{tpu_custom_call.1} parent=1 // pred_region
      _
    $region5: #{tpu_custom_call.1} parent=1 // pred_fallthru
      _
    // Predicated region
    $region6: #{tpu_custom_call.1} parent=1 // pred_check
      _
    $region7: #{tpu_custom_call.1} parent=1 // pred_check_branch
      %18 = sbr.rel (0) target = $region9
    $region8: #{tpu_custom_call.1} parent=1 // pred_region
      _
    $region9: #{tpu_custom_call.1} parent=1 // pred_fallthru
      _
    // Predicated region
    $region10: #{tpu_custom_call.1} parent=1 // pred_check
      _
    $region11: #{tpu_custom_call.1} parent=1 // pred_check_branch
      %20 = sbr.rel (0) target = $region13
    $region12: #{tpu_custom_call.1} parent=1 // pred_region
      _
    $region13: #{tpu_custom_call.1} parent=1 // pred_fallthru
      _
    // Predicated region
    $region14: #{tpu_custom_call.1} parent=1 // pred_check
      _
    $region15: #{tpu_custom_call.1} parent=1 // pred_check_branch
      %22 = sbr.rel (0) target = $region17
    $region16: #{tpu_custom_call.1} parent=1 // pred_region
      _
    $region17: #{tpu_custom_call.1} parent=1 // pred_fallthru
      _
    // Predicated region
    $region18: #{tpu_custom_call.1} parent=1 // pred_check
      _
    $region19: #{tpu_custom_call.1} parent=1 // pred_check_branch
      %24 = sbr.rel (0) target = $region21
    $region20: #{tpu_custom_call.1} parent=1 // pred_region
      _
    $region21: #{tpu_custom_call.1} parent=1 // pred_fallthru
      _
    // Predicated region
    $region22: #{tpu_custom_call.1} parent=1 // pred_check
      _
    $region23: #{tpu_custom_call.1} parent=1 // pred_check_branch
      %26 = sbr.rel (0) target = $region25
    $region24: #{tpu_custom_call.1} parent=1 // pred_region
      _
    $region25: #{tpu_custom_call.1} parent=1 // pred_fallthru
      _
    // Predicated region
    $region26: #{tpu_custom_call.1} parent=1 // pred_check
      _
    $region27: #{tpu_custom_call.1} parent=1 // pred_check_branch
      %28 = sbr.rel (0) target = $region29
    $region28: #{tpu_custom_call.1} parent=1 // pred_region
      _
    $region29: #{tpu_custom_call.1} parent=1 // pred_fallthru
      _
    %v29 = vld [vmem:[%s0] sm:$0xff]
    %v30 = vld [vmem:[%s1] sm:$0xff]
    %v31 = vld [vmem:[%s2] sm:$0xff]
    %v32 = vld [vmem:[%s2 + $0x8] sm:$0xff]
    %v33 = vld [vmem:[%s2 + $0x10] sm:$0xff]
    %v34 = vld [vmem:[%s2 + $0x18] sm:$0xff]
    %v35 = vld [vmem:[%s3] sm:$0x3]
    %vm36 = vcmask 15360
    %v38 = vsel %vm36, %v30, 0
    %vm40 = vcmask 1041408
    %v42 = vsel %vm40, %v35, 0
    %44 = vmatprep.subr.mxu0 0.0
    %45 = vmatpush1.msra.mxu0 %v42
    %46 = vmatprep.subr.mxu0 0.0
    %47 = vmatpush1.msra.mxu0 0.0
    %48 = vmatprep.subr.mxu0 0.0
    %49 = vmatpush1.msra.mxu0 0.0
    %50 = vmatprep.subr.mxu0 0.0
    %51 = vmatpush1.msra.mxu0 0.0
    %52 = vmatprep.subr.mxu0 0.0
    %53 = vmatpush1.msra.mxu0 0.0
    %54 = vmatprep.subr.mxu0 0.0
    %55 = vmatpush1.msra.mxu0 0.0
    %56 = vmatprep.subr.mxu0 0.0
    %57 = vmatpush1.msra.mxu0 0.0
    %58 = vmatprep.subr.mxu0 0.0
    %59 = vmatpush1.msra.mxu0 0.0
    %60 = vmatprep.subr.mxu0 0.0
    %61 = vmatpush1.msra.mxu0 0.0
    %62 = vmatprep.subr.mxu0 0.0
    %63 = vmatpush1.msra.mxu0 0.0
    %64 = vmatprep.subr.mxu0 0.0
    %65 = vmatpush1.msra.mxu0 0.0
    %66 = vmatprep.subr.mxu0 0.0
    %67 = vmatpush1.msra.mxu0 0.0
    %68 = vmatprep.subr.mxu0 0.0
    %69 = vmatpush1.msra.mxu0 0.0
    %70 = vmatprep.subr.mxu0 0.0
    %71 = vmatpush1.msra.mxu0 0.0
    %72 = vmatprep.subr.mxu0 0.0
    %73 = vmatpush1.msra.mxu0 0.0
    %74 = vmatprep.subr.mxu0 0.0
    %75 = vmatpush1.msra.mxu0 0.0
    %76 = vmatprep.subr.mxu0 0.0
    %77 = vmatpush1.msra.mxu0 0.0
    %78 = vmatprep.subr.mxu0 0.0
    %79 = vmatpush1.msra.mxu0 0.0
    %80 = vmatprep.subr.mxu0 0.0
    %81 = vmatpush1.msra.mxu0 0.0
    %82 = vmatprep.subr.mxu0 0.0
    %83 = vmatpush1.msra.mxu0 0.0
    %84 = vmatprep.subr.mxu0 0.0
    %85 = vmatpush1.msra.mxu0 0.0
    %86 = vmatprep.subr.mxu0 0.0
    %87 = vmatpush1.msra.mxu0 0.0
    %88 = vmatprep.subr.mxu0 0.0
    %89 = vmatpush1.msra.mxu0 0.0
    %90 = vmatprep.subr.mxu0 0.0
    %91 = vmatpush1.msra.mxu0 0.0
    %92 = vmatprep.subr.mxu0 0.0
    %93 = vmatpush1.msra.mxu0 0.0
    %94 = vmatprep.subr.mxu0 0.0
    %95 = vmatpush1.msra.mxu0 0.0
    %96 = vmatprep.subr.mxu0 0.0
    %97 = vmatpush1.msra.mxu0 0.0
    %98 = vmatprep.subr.mxu0 0.0
    %99 = vmatpush1.msra.mxu0 0.0
    %100 = vmatprep.subr.mxu0 0.0
    %101 = vmatpush1.msra.mxu0 0.0
    %102 = vmatprep.subr.mxu0 0.0
    %103 = vmatpush1.msra.mxu0 0.0
    %104 = vmatprep.subr.mxu0 0.0
    %105 = vmatpush1.msra.mxu0 0.0
    %106 = vmatprep.subr.mxu0 0.0
    %107 = vmatpush1.msra.mxu0 0.0
    %108 = vmatprep.mubr.f32.mxu0 0.0
    %109 = vmatmul.mubr.f32.gmra.mrb[0].mxu0 %v38
    %v110 = vpop.f32.mrb[0].mxu0
    %v111 = vadd.f32 0.0, %v110
    %v112 = vpop.f32.mrb[0].mxu0
    %113 = vdwg.mxu0
    %vm114 = vcmask 261120
    %v116 = vsel %vm114, %v29, 0
    %118 = vmatprep.subr.mxu0 0.0
    %119 = vmatpush1.msra.mxu0 %v31
    %120 = vmatprep.subr.mxu0 0.0
    %121 = vmatpush1.msra.mxu0 %v32
    %122 = vmatprep.subr.mxu0 0.0
    %123 = vmatpush1.msra.mxu0 %v33
    %124 = vmatprep.subr.mxu0 0.0
    %125 = vmatpush1.msra.mxu0 %v34
    %126 = vmatprep.subr.mxu0 0.0
    %127 = vmatpush1.msra.mxu0 0.0
    %128 = vmatprep.subr.mxu0 0.0
    %129 = vmatpush1.msra.mxu0 0.0
    %130 = vmatprep.subr.mxu0 0.0
    %131 = vmatpush1.msra.mxu0 0.0
    %132 = vmatprep.subr.mxu0 0.0
    %133 = vmatpush1.msra.mxu0 0.0
    %134 = vmatprep.subr.mxu0 0.0
    %135 = vmatpush1.msra.mxu0 0.0
    %136 = vmatprep.subr.mxu0 0.0
    %137 = vmatpush1.msra.mxu0 0.0
    %138 = vmatprep.subr.mxu0 0.0
    %139 = vmatpush1.msra.mxu0 0.0
    %140 = vmatprep.subr.mxu0 0.0
    %141 = vmatpush1.msra.mxu0 0.0
    %142 = vmatprep.subr.mxu0 0.0
    %143 = vmatpush1.msra.mxu0 0.0
    %144 = vmatprep.subr.mxu0 0.0
    %145 = vmatpush1.msra.mxu0 0.0
    %146 = vmatprep.subr.mxu0 0.0
    %147 = vmatpush1.msra.mxu0 0.0
    %148 = vmatprep.subr.mxu0 0.0
    %149 = vmatpush1.msra.mxu0 0.0
    %150 = vmatprep.subr.mxu0 0.0
    %151 = vmatpush1.msra.mxu0 0.0
    %152 = vmatprep.subr.mxu0 0.0
    %153 = vmatpush1.msra.mxu0 0.0
    %154 = vmatprep.subr.mxu0 0.0
    %155 = vmatpush1.msra.mxu0 0.0
    %156 = vmatprep.subr.mxu0 0.0
    %157 = vmatpush1.msra.mxu0 0.0
    %158 = vmatprep.subr.mxu0 0.0
    %159 = vmatpush1.msra.mxu0 0.0
    %160 = vmatprep.subr.mxu0 0.0
    %161 = vmatpush1.msra.mxu0 0.0
    %162 = vmatprep.subr.mxu0 0.0
    %163 = vmatpush1.msra.mxu0 0.0
    %164 = vmatprep.subr.mxu0 0.0
    %165 = vmatpush1.msra.mxu0 0.0
    %166 = vmatprep.subr.mxu0 0.0
    %167 = vmatpush1.msra.mxu0 0.0
    %168 = vmatprep.subr.mxu0 0.0
    %169 = vmatpush1.msra.mxu0 0.0
    %170 = vmatprep.subr.mxu0 0.0
    %171 = vmatpush1.msra.mxu0 0.0
    %172 = vmatprep.subr.mxu0 0.0
    %173 = vmatpush1.msra.mxu0 0.0
    %174 = vmatprep.subr.mxu0 0.0
    %175 = vmatpush1.msra.mxu0 0.0
    %176 = vmatprep.subr.mxu0 0.0
    %177 = vmatpush1.msra.mxu0 0.0
    %178 = vmatprep.subr.mxu0 0.0
    %179 = vmatpush1.msra.mxu0 0.0
    %180 = vmatprep.subr.mxu0 0.0
    %181 = vmatpush1.msra.mxu0 0.0
    %182 = vmatprep.mubr.f32.mxu0 0.0
    %183 = vmatmul.mubr.f32.gmra.mrb[0].mxu0 %v116
    %v184 = vpop.f32.mrb[0].mxu0
    %v185 = vadd.f32 %v111, %v184
    %v186 = vpop.f32.mrb[0].mxu0
    %187 = vdwg.mxu0
    %v188 = vld [vmem:[%s4] sm:$0x1]
    %v190 = vlaneseq
    %v191 = vshrl.u32 %v190, 7
    %v192 = vsub.s32 0, %v191
    %v193 = vrot.slane %v188, %v192
    %v195 = vadd.f32 %v185, %v193
    %v196 = vmax.f32 %v195, 0.0
    %vm197 = vcmask 130048
    %198 = vst.msk [vmem:[#allocation2] sm:$0xff] %vm197, %v196
    %v199 = vld [vmem:[%s5] sm:$0xff]
    %v200 = vld [vmem:[%s5 + $0x8] sm:$0xff]
    %v201 = vld [vmem:[%s6] sm:$0x1]
    %v203 = vlaneseq
    %v204 = vshrl.u32 %v203, 7
    %v205 = vsub.s32 0, %v204
    %v206 = vrot.slane %v201, %v205
    %v209 = vsel %vm197, %v196, 0
    %211 = vmatprep.subr.mxu0 0.0
    %212 = vmatpush1.msra.mxu0 %v199
    %213 = vmatprep.subr.mxu0 0.0
    %214 = vmatpush1.msra.mxu0 %v200
    %215 = vmatprep.subr.mxu0 0.0
    %216 = vmatpush1.msra.mxu0 0.0
    %217 = vmatprep.subr.mxu0 0.0
    %218 = vmatpush1.msra.mxu0 0.0
    %219 = vmatprep.subr.mxu0 0.0
    %220 = vmatpush1.msra.mxu0 0.0
    %221 = vmatprep.subr.mxu0 0.0
    %222 = vmatpush1.msra.mxu0 0.0
    %223 = vmatprep.subr.mxu0 0.0
    %224 = vmatpush1.msra.mxu0 0.0
    %225 = vmatprep.subr.mxu0 0.0
    %226 = vmatpush1.msra.mxu0 0.0
    %227 = vmatprep.subr.mxu0 0.0
    %228 = vmatpush1.msra.mxu0 0.0
    %229 = vmatprep.subr.mxu0 0.0
    %230 = vmatpush1.msra.mxu0 0.0
    %231 = vmatprep.subr.mxu0 0.0
    %232 = vmatpush1.msra.mxu0 0.0
    %233 = vmatprep.subr.mxu0 0.0
    %234 = vmatpush1.msra.mxu0 0.0
    %235 = vmatprep.subr.mxu0 0.0
    %236 = vmatpush1.msra.mxu0 0.0
    %237 = vmatprep.subr.mxu0 0.0
    %238 = vmatpush1.msra.mxu0 0.0
    %239 = vmatprep.subr.mxu0 0.0
    %240 = vmatpush1.msra.mxu0 0.0
    %241 = vmatprep.subr.mxu0 0.0
    %242 = vmatpush1.msra.mxu0 0.0
    %243 = vmatprep.subr.mxu0 0.0
    %244 = vmatpush1.msra.mxu0 0.0
    %245 = vmatprep.subr.mxu0 0.0
    %246 = vmatpush1.msra.mxu0 0.0
    %247 = vmatprep.subr.mxu0 0.0
    %248 = vmatpush1.msra.mxu0 0.0
    %249 = vmatprep.subr.mxu0 0.0
    %250 = vmatpush1.msra.mxu0 0.0
    %251 = vmatprep.subr.mxu0 0.0
    %252 = vmatpush1.msra.mxu0 0.0
    %253 = vmatprep.subr.mxu0 0.0
    %254 = vmatpush1.msra.mxu0 0.0
    %255 = vmatprep.subr.mxu0 0.0
    %256 = vmatpush1.msra.mxu0 0.0
    %257 = vmatprep.subr.mxu0 0.0
    %258 = vmatpush1.msra.mxu0 0.0
    %259 = vmatprep.subr.mxu0 0.0
    %260 = vmatpush1.msra.mxu0 0.0
    %261 = vmatprep.subr.mxu0 0.0
    %262 = vmatpush1.msra.mxu0 0.0
    %263 = vmatprep.subr.mxu0 0.0
    %264 = vmatpush1.msra.mxu0 0.0
    %265 = vmatprep.subr.mxu0 0.0
    %266 = vmatpush1.msra.mxu0 0.0
    %267 = vmatprep.subr.mxu0 0.0
    %268 = vmatpush1.msra.mxu0 0.0
    %269 = vmatprep.subr.mxu0 0.0
    %270 = vmatpush1.msra.mxu0 0.0
    %271 = vmatprep.subr.mxu0 0.0
    %272 = vmatpush1.msra.mxu0 0.0
    %273 = vmatprep.subr.mxu0 0.0
    %274 = vmatpush1.msra.mxu0 0.0
    %275 = vmatprep.mubr.f32.mxu0 0.0
    %276 = vmatmul.mubr.f32.gmra.mrb[0].mxu0 %v209
    %v277 = vpop.f32.mrb[0].mxu0
    %v278 = vadd.f32 %v206, %v277
    %v279 = vpop.f32.mrb[0].mxu0
    %280 = vdwg.mxu0
    %vm281 = vcmask 31744
    %282 = vst.msk [vmem:[%s7] sm:$0xff] %vm281, %v278
    // Predicated region
    $region30: #{tpu_custom_call.1} parent=1 // pred_check
      _
    $region31: #{tpu_custom_call.1} parent=1 // pred_check_branch
      %284 = sbr.rel (0) target = $region33
    $region32: #{tpu_custom_call.1} parent=1 // pred_region
      _
    $region33: #{tpu_custom_call.1} parent=1 // pred_fallthru
      _
    // Predicated region
    $region34: #{tpu_custom_call.1} parent=1 // pred_check
      _
    $region35: #{tpu_custom_call.1} parent=1 // pred_check_branch
      %286 = sbr.rel (0) target = $region37
    $region36: #{tpu_custom_call.1} parent=1 // pred_region
      %s288 = ssub.s32 128, 128
      %289 = vsyncadd [#allocation3], %s288
      %s291 = sshll.u32 [#allocation2], 4
      %s292 = int_to_ptr.vmem [resolvable:$true] %s291
      %294 = dma.vmem_to_hbm [thread:$0]  %s292, 128, %s8, [#allocation3]
    $region37: #{tpu_custom_call.1} parent=1 // pred_fallthru
      _
    // Predicated region
    $region38: #{tpu_custom_call.1} parent=1 // pred_check
      _
    $region39: #{tpu_custom_call.1} parent=1 // pred_check_branch
      %296 = sbr.rel (0) target = $region41
    $region40: #{tpu_custom_call.1} parent=1 // pred_region
      _
    $region41: #{tpu_custom_call.1} parent=1 // pred_fallthru
      _
    // Predicated region
    $region42: #{tpu_custom_call.1} parent=1 // pred_check
      _
    $region43: #{tpu_custom_call.1} parent=1 // pred_check_branch
      %298 = sbr.rel (0) target = $region45
    $region44: #{tpu_custom_call.1} parent=1 // pred_region
      %299 = dma.done [#allocation3], 128
    $region45: #{tpu_custom_call.1} parent=1 // pred_fallthru
      _
    %300 = vsyncpa [#allocation3], 1

</llo_original>
